<compile_context>
chip_gen: v7x
topology: tpu7x:2x2x1
jax: 0.10.0
libtpu: 0.0.40
codegen_flags: <defaults>
</compile_context>

<pallas_src>
import functools
import math

import jax
import jax.numpy as jnp
from jax import lax
from jax.experimental import pallas as pl
from jax.experimental.pallas import tpu as pltpu


def _round_up(x, m):
    return (x + m - 1) // m * m


def fuse_head_params(wk, wq, wv, *, scale_dim=None, dtype=jnp.bfloat16,
                     lane_multiple=128):
    """Fuse the three projection weights into one (C, 2H + Hp) operand.

    Done ONCE at init (hoisted out of the forward path).  Layout:
        [ Wk | Wq * scale | Wv | zeros(C, Hp - H) ]
    * scale = scale_dim**-0.5 is folded into the Wq columns (the PyTorch
      module scales by C = n_embd = x.shape[-1], not by head_size).
    * Wv is zero-padded to Hp = round_up(H, lane_multiple) so the kernel's
      output block is lane-dense (unmasked stores).  lane_multiple=1 disables
      the padding.
    """
    C, H = wk.shape
    assert wq.shape == (C, H) and wv.shape == (C, H)
    scale = (C if scale_dim is None else scale_dim) ** (-0.5)
    Hp = _round_up(H, lane_multiple)
    parts = [wk, wq * scale, wv]
    if Hp != H:
        parts.append(jnp.zeros((C, Hp - H), dtype=wv.dtype))
    return jnp.concatenate(parts, axis=1).astype(dtype)


def _head_kernel(x_ref, w_ref, o_ref, *, head_size, compute_dtype):
    # x_ref: (bb, T, C) bf16   w_ref: (C, 2H+Hp) bf16 = [Wk | Wq*s | Wv | pad]
    # o_ref: (bb, T, Hp)
    bb, T, C = x_ref.shape
    H = head_size

    # Fused QKV projection: (bb*T, C) @ (C, 2H+Hp) on the MXU, f32 accumulate.
    # Collapsing (bb, T) -> M improves MXU row fill; with bb=1 it is a free
    # unit-dim squeeze (no tiled-dim relayout).
    x2d = x_ref[...].reshape(bb * T, C)
    kqv = jnp.dot(x2d, w_ref[...], preferred_element_type=jnp.float32)
    kqv = kqv.reshape(bb, T, kqv.shape[-1])

    k = kqv[..., :H]             # (bb, T, H)  f32
    q = kqv[..., H:2 * H]        # (bb, T, H)  f32; scale already folded in Wq
    v = kqv[..., 2 * H:]         # (bb, T, Hp) f32; columns >= H are zero
    # NOTE: at production H (multiple of 128, fused heads) these lane slices
    # are tile-aligned zero-cost views; at H=16 they are cheap small copies.

    # Attention scores q @ k^T without an explicit transpose: contract the H
    # axes, batch over bb.  bf16 MXU operands, f32 accumulation.
    wei = lax.dot_general(q.astype(compute_dtype), k.astype(compute_dtype),
                          (((2,), (2,)), ((0,), (0,))),
                          preferred_element_type=jnp.float32)     # (bb, T, T)

    # Causal (tril) mask; the diagonal is never masked so -inf is safe.
    row = lax.broadcasted_iota(jnp.int32, (T, T), 0)
    col = lax.broadcasted_iota(jnp.int32, (T, T), 1)
    wei = jnp.where((col <= row)[None, :, :], wei, -jnp.inf)

    # Numerically stable softmax in f32; reciprocal goes to the EUP slot.
    m = jnp.max(wei, axis=-1, keepdims=True)
    e = jnp.exp(wei - m)
    p = e * pl.reciprocal(jnp.sum(e, axis=-1, keepdims=True), approx=True)

    # dropout == identity (eval mode).
    # TODO(synk): training-mode dropout via pltpu.prng_seed + stateful_bernoulli.

    # out = p @ v, batched over bb; bf16 operands / f32 accumulate.  The Hp
    # lane width keeps the output store unmasked (lane-dense).
    out = lax.dot_general(p.astype(compute_dtype), v.astype(compute_dtype),
                          (((2,), (1,)), ((0,), (0,))),
                          preferred_element_type=jnp.float32)     # (bb, T, Hp)
    o_ref[...] = out.astype(o_ref.dtype)


def head_forward(x, w_fused, head_size, *, batch_block=None,
                 compute_dtype=jnp.bfloat16):
    """x: (B, T, C); w_fused: (C, 2H + Hp) from fuse_head_params.

    Returns (B, T, head_size) in x.dtype.
    """
    B, T, C = x.shape
    H = head_size
    N = w_fused.shape[1]
    Hp = N - 2 * H
    assert w_fused.shape[0] == C and Hp >= H

    # batch_block=1 by default: grid has B steps, so the input-fetch /
    # output-writeback pipeline and the v7x megacore "parallel" sharding are
    # both live.  Raise it for very large B to amortize the ~0.35us/step grid
    # overhead.
    bb = 1 if batch_block is None else min(batch_block, B)
    assert B % bb == 0, "batch_block must divide B"
    num_blocks = B // bb

    # bf16 at the HBM boundary (ideally x already arrives bf16 from upstream).
    x_in = x.astype(compute_dtype)
    in_bytes = jnp.dtype(compute_dtype).itemsize
    out_bytes = jnp.dtype(x.dtype).itemsize

    # Explicit VMEM budget: double-buffered x/out blocks + resident weight +
    # f32 intermediates (kqv, ~3 live copies of the (bb,T,T) scores, out).
    est = (2 * bb * T * C * in_bytes + 2 * C * N * in_bytes
           + 2 * bb * T * Hp * out_bytes
           + bb * T * N * 4 + 4 * bb * T * T * 4 + bb * T * Hp * 4)
    vmem_limit = int(min(max(2 * est, 32 * 1024 * 1024), 48 * 1024 * 1024))

    kernel = functools.partial(_head_kernel, head_size=H,
                               compute_dtype=compute_dtype)

    out_padded = pl.pallas_call(
        kernel,
        out_shape=jax.ShapeDtypeStruct((B, T, Hp), x.dtype),
        grid_spec=pltpu.PrefetchScalarGridSpec(
            num_scalar_prefetch=0,
            grid=(num_blocks,),
            in_specs=[
                pl.BlockSpec((bb, T, C), lambda i: (i, 0, 0)),    # x block
                pl.BlockSpec((C, N), lambda i: (0, 0)),           # fused QKV w
            ],
            out_specs=pl.BlockSpec((bb, T, Hp), lambda i: (i, 0, 0)),
        ),
        compiler_params=pltpu.CompilerParams(
            dimension_semantics=("parallel",),      # batch shards on megacore
            vmem_limit_bytes=vmem_limit),
    )(x_in, w_fused)

    return out_padded[..., :H] if Hp != H else out_padded


def reference_forward(x, wk, wq, wv):
    """Pure f32 reference mirroring the PyTorch module (eval mode)."""
    B, T, C = x.shape
    k = jnp.einsum("btc,ch->bth", x, wk)
    q = jnp.einsum("btc,ch->bth", x, wq)
    v = jnp.einsum("btc,ch->bth", x, wv)
    wei = jnp.einsum("bth,bsh->bts", q, k) * C ** (-0.5)
    mask = jnp.tril(jnp.ones((T, T), dtype=bool))
    wei = jnp.where(mask[None, :, :], wei, -jnp.inf)
    wei = jax.nn.softmax(wei, axis=-1)
    out = jnp.einsum("bts,bsh->bth", wei, v)
    return out.astype(x.dtype)


def reference_forward_matched(x, w_fused, head_size):
    """Precision-matched reference: same bf16 fused weight (scale folded),
    bf16 MXU operands, f32 accumulation — only the exact softmax differs from
    the kernel's approx reciprocal."""
    B, T, C = x.shape
    H = head_size
    xb = x.astype(w_fused.dtype)
    kqv = jnp.einsum("btc,cn->btn", xb, w_fused,
                     preferred_element_type=jnp.float32)
    k = kqv[..., :H]
    q = kqv[..., H:2 * H]
    v = kqv[..., 2 * H:3 * H]
    wei = jnp.einsum("bth,bsh->bts", q.astype(jnp.bfloat16),
                     k.astype(jnp.bfloat16),
                     preferred_element_type=jnp.float32)
    mask = jnp.tril(jnp.ones((T, T), dtype=bool))
    wei = jnp.where(mask[None, :, :], wei, -jnp.inf)
    wei = jax.nn.softmax(wei, axis=-1)
    out = jnp.einsum("bts,bsh->bth", wei.astype(jnp.bfloat16),
                     v.astype(jnp.bfloat16),
                     preferred_element_type=jnp.float32)
    return out.astype(x.dtype)


if __name__ == "__main__":
    # Small shapes consistent with the module: B=4, T(seq)=16, C(n_embd)=32,
    # head_size=16.  (Module defaults n_embd=256 / block_size=256, scaled down
    # for a fast deterministic smoke test.)
    B, T, C, H = 4, 16, 32, 16

    key = jax.random.PRNGKey(0)
    kx, kk, kq, kv = jax.random.split(key, 4)

    x = jax.random.normal(kx, (B, T, C), dtype=jnp.float32)
    # nn.Linear(n_embd, head_size, bias=False): weight (H, C); store transposed.
    wk = (jax.random.normal(kk, (H, C), dtype=jnp.float32) / math.sqrt(C)).T
    wq = (jax.random.normal(kq, (H, C), dtype=jnp.float32) / math.sqrt(C)).T
    wv = (jax.random.normal(kv, (H, C), dtype=jnp.float32) / math.sqrt(C)).T

    # One-time init: fuse weights, fold the C**-0.5 scale into Wq, pad Wv to
    # a 128-lane multiple, store bf16.
    w_fused = fuse_head_params(wk, wq, wv)

    out = jax.block_until_ready(head_forward(x, w_fused, H))
    assert out.shape == (B, T, H), out.shape

    # Tight check vs a precision-matched (bf16 operand / f32 accumulate) ref.
    ref_matched = reference_forward_matched(x, w_fused, H)
    err_m = float(jnp.max(jnp.abs(out - ref_matched)))
    assert jnp.allclose(out, ref_matched, atol=2e-2, rtol=2e-2), err_m

    # Sanity check vs the full-f32 module-semantics reference (loose tol: bf16
    # MXU operands + scale folded into a bf16 weight).
    ref_f32 = reference_forward(x, wk, wq, wv)
    err_f = float(jnp.max(jnp.abs(out - ref_f32)))
    assert jnp.allclose(out, ref_f32, atol=1e-1, rtol=1e-1), err_f

    print("KERNEL_OK")
</pallas_src>

<mosaic_0001>
module attributes {stable_mosaic.version = 11 : i64} {
  func.func @_head_kernel(%arg0: i32, %arg1: memref<1x16x32xbf16, #tpu.memory_space<vmem>>, %arg2: memref<32x160xbf16, #tpu.memory_space<vmem>>, %arg3: memref<1x16x128xf32, #tpu.memory_space<vmem>>) attributes {dimension_semantics = [#tpu.dimension_semantics<parallel>], iteration_bounds = array<i64: 4>, scalar_prefetch = 0 : i64, scratch_operands = 0 : i64, tpu.core_type = #tpu.core_type<tc>, window_params = [{transform_indices = @transform_0, window_bounds = array<i64: 1, 16, 32>}, {pipeline_mode = #tpu.pipeline_mode<synchronous>, transform_indices = @transform_1, window_bounds = array<i64: 32, 160>}, {transform_indices = @transform_2, window_bounds = array<i64: 1, 16, 128>}]} {
    %c0 = arith.constant 0 : index
    %c0_0 = arith.constant 0 : index
    %c0_1 = arith.constant 0 : index
    %0 = vector.load %arg1[%c0, %c0_0, %c0_1] : memref<1x16x32xbf16, #tpu.memory_space<vmem>>, vector<1x16x32xbf16>
    %1 = vector.shape_cast %0 : vector<1x16x32xbf16> to vector<16x32xbf16>
    %c0_2 = arith.constant 0 : index
    %c0_3 = arith.constant 0 : index
    %2 = vector.load %arg2[%c0_2, %c0_3] : memref<32x160xbf16, #tpu.memory_space<vmem>>, vector<32x160xbf16>
    %cst = arith.constant dense<0.000000e+00> : vector<16x160xf32>
    %3 = tpu.matmul %1, %2, %cst {dimension_numbers = #tpu.dot_dimension_numbers<[1], [0], [0], [1], [0, 0, 1, 1], [], []>} : vector<16x32xbf16>, vector<32x160xbf16>, vector<16x160xf32> -> vector<16x160xf32>
    %4 = vector.shape_cast %3 : vector<16x160xf32> to vector<1x16x160xf32>
    %5 = vector.extract_strided_slice %4 {offsets = [0, 0, 0], sizes = [1, 16, 16], strides = [1, 1, 1]} : vector<1x16x160xf32> to vector<1x16x16xf32>
    %6 = vector.extract_strided_slice %4 {offsets = [0, 0, 16], sizes = [1, 16, 16], strides = [1, 1, 1]} : vector<1x16x160xf32> to vector<1x16x16xf32>
    %7 = vector.extract_strided_slice %4 {offsets = [0, 0, 32], sizes = [1, 16, 128], strides = [1, 1, 1]} : vector<1x16x160xf32> to vector<1x16x128xf32>
    %8 = arith.truncf %6 : vector<1x16x16xf32> to vector<1x16x16xbf16>
    %9 = arith.truncf %5 : vector<1x16x16xf32> to vector<1x16x16xbf16>
    %cst_4 = arith.constant dense<0.000000e+00> : vector<1x16x16xf32>
    %10 = tpu.matmul %8, %9, %cst_4 {dimension_numbers = #tpu.dot_dimension_numbers<[2], [2], [1], [1], [0, 0, 0, 1, 1, 1], [0], [0]>} : vector<1x16x16xbf16>, vector<1x16x16xbf16>, vector<1x16x16xf32> -> vector<1x16x16xf32>
    %11 = tpu.iota {dimensions = array<i32: 0>} : vector<16x16xi32>
    %12 = tpu.iota {dimensions = array<i32: 1>} : vector<16x16xi32>
    %13 = arith.cmpi sle, %12, %11 : vector<16x16xi32>
    %14 = vector.shape_cast %13 : vector<16x16xi1> to vector<1x16x16xi1>
    %cst_5 = arith.constant 0xFF800000 : f32
    %15 = vector.broadcast %cst_5 : f32 to vector<1x16x16xf32>
    %16 = arith.select %14, %10, %15 : vector<1x16x16xi1>, vector<1x16x16xf32>
    %cst_6 = arith.constant dense<0xFF800000> : vector<1x16xf32>
    %17 = vector.multi_reduction <maximumf>, %16, %cst_6 [2] : vector<1x16x16xf32> to vector<1x16xf32>
    %18 = vector.shape_cast %17 : vector<1x16xf32> to vector<1x16x1xf32>
    %19 = vector.broadcast %18 : vector<1x16x1xf32> to vector<1x16x16xf32>
    %20 = arith.subf %16, %19 : vector<1x16x16xf32>
    %21 = math.exp %20 : vector<1x16x16xf32>
    %cst_7 = arith.constant dense<0.000000e+00> : vector<1x16xf32>
    %22 = vector.multi_reduction <add>, %21, %cst_7 [2] : vector<1x16x16xf32> to vector<1x16xf32>
    %23 = vector.shape_cast %22 : vector<1x16xf32> to vector<1x16x1xf32>
    %24 = tpu.reciprocal %23 {approx = true} : vector<1x16x1xf32> -> vector<1x16x1xf32>
    %25 = vector.broadcast %24 : vector<1x16x1xf32> to vector<1x16x16xf32>
    %26 = arith.mulf %21, %25 : vector<1x16x16xf32>
    %27 = arith.truncf %26 : vector<1x16x16xf32> to vector<1x16x16xbf16>
    %28 = arith.truncf %7 : vector<1x16x128xf32> to vector<1x16x128xbf16>
    %cst_8 = arith.constant dense<0.000000e+00> : vector<1x16x128xf32>
    %29 = tpu.matmul %27, %28, %cst_8 {dimension_numbers = #tpu.dot_dimension_numbers<[2], [1], [1], [2], [0, 0, 0, 1, 1, 2], [0], [0]>} : vector<1x16x16xbf16>, vector<1x16x128xbf16>, vector<1x16x128xf32> -> vector<1x16x128xf32>
    %c0_9 = arith.constant 0 : index
    %c0_10 = arith.constant 0 : index
    %c0_11 = arith.constant 0 : index
    %30 = vector.load %arg3[%c0_9, %c0_10, %c0_11] : memref<1x16x128xf32, #tpu.memory_space<vmem>>, vector<1x16x128xf32>
    tpu.vector_store %arg3[%c0_9, %c0_10, %c0_11], %29 {strides = array<i32>} : memref<1x16x128xf32, #tpu.memory_space<vmem>>, vector<1x16x128xf32>,
    return
  }
  func.func @transform_0(%arg0: i32) -> (i32, i32, i32) {
    %c0_i32 = arith.constant 0 : i32
    %c0_i32_0 = arith.constant 0 : i32
    %c0_i32_1 = arith.constant 0 : i32
    return %arg0, %c0_i32, %c0_i32_0 : i32, i32, i32
  }
  func.func @transform_1(%arg0: i32) -> (i32, i32) {
    %c0_i32 = arith.constant 0 : i32
    %c0_i32_0 = arith.constant 0 : i32
    %c0_i32_1 = arith.constant 0 : i32
    return %c0_i32, %c0_i32_0 : i32, i32
  }
  func.func @transform_2(%arg0: i32) -> (i32, i32, i32) {
    %c0_i32 = arith.constant 0 : i32
    %c0_i32_0 = arith.constant 0 : i32
    %c0_i32_1 = arith.constant 0 : i32
    return %arg0, %c0_i32, %c0_i32_0 : i32, i32, i32
  }
}

</mosaic_0001>

<llo_original>
// kernel: tpu_custom_call.1
$region0: #{tpu_custom_call.1}
  #allocation0 [shape = 'u32[]', space=smem, size = 0x4, offset = 0x4, fixed_abs, tag = 'smem constant byte address 0x4 - core index']
  #allocation1 [shape = 'u32[144,128]{1,0:T(1,128)}', space=vmem, size = 0x12000, scoped, tag = 'internal scratch']
  %s0 = inlined_call_operand.hbm [shape: bf16[4,16,32], index: 0, kind: input, shape index: {}]
  %s1 = inlined_call_operand.hbm [shape: bf16[32,160], index: 1, kind: input, shape index: {}]
  %s2 = inlined_call_operand.hbm [shape: f32[4,16,128], index: 2, kind: output, shape index: {}]
  %s3 = sld [smem:[#allocation0]]
  $region49: #{tpu_custom_call.1} parent=0
    _
  %s5 = ssub.s32 1, %s3
  %s6 = scalar_select 0, %s5, %s3
  $region1: #{tpu_custom_call.1} parent=0
    #allocation2 [shape = 'u8[8192]{0}', space=vmem, size = 0x2000, scoped, tag = 'input window, operand 0']
    #allocation3 [shape = 's32[2]{0}', space=sflag, size = 0x8, scoped, tag = 'scoped memory for tpu_custom_call.1']
    #allocation4 [shape = 's32[2]{0}', space=sflag, size = 0x8, scoped, tag = 'scoped memory for tpu_custom_call.1']
    #allocation5 [shape = 'u8[16384]{0}', space=vmem, size = 0x4000, scoped, tag = 'input window, operand 1, single buffered']
    #allocation6 [shape = 's32[1]{0}', space=sflag, size = 0x4, scoped, tag = 'scoped memory for tpu_custom_call.1']
    #allocation7 [shape = 'u8[16384]{0}', space=vmem, size = 0x4000, scoped, tag = 'output window, operand 0']
    %7 = vsyncpa [#allocation3], 0
    %s8 = scalar_lea.sflag [#allocation3], 1
    %9 = vsyncpa %s8, 0
    %10 = vsyncpa [#allocation6], 0
    %11 = vsyncpa [#allocation4], 0
    %s12 = scalar_lea.sflag [#allocation4], 1
    %13 = vsyncpa %s12, 0
    loop: start=0, step=1, limit=6
    $region2: #{tpu_custom_call.1} parent=1 // loop_pre_header
      _
    $region3: #{tpu_custom_call.1} parent=1 // loop_header
      %s15 = sphi 0, %s19
      %p16 = scmp.ge.s32.totalorder %s15, 6
      %s25 = sphi 0, %s27
      %s28 = sphi 0, %s25
      %s29 = sphi 0, %s28
      %s45 = sphi 0, %s29
      %s49 = sphi 0, %s49
      %s51 = sphi 0, %s49
      %s52 = sphi 0, %s51
      %s66 = sphi 0, %s52
      %s72 = sphi 0, %s74
      %s75 = sphi 0, %s72
      %s76 = sphi 0, %s75
      %s92 = sphi 0, %s76
    $region4: #{tpu_custom_call.1} parent=1 // loop_header_branch
      %18 = sbr.rel (%p16) target = $region8
    $region5: #{tpu_custom_call.1} parent=1 // loop_body
      %s20 = ssub.s32 %s15, 1
      %s21 = ssub.s32 %s15, 2
      %s22 = sadd.s32 %s15, 1
      %s23 = ssub.s32 %s15, %s22
      %p24 = scmp.eq.s32.totalorder %s23, 0
      %s26 = sadd.s32 %s25, 1
      %s27 = scalar_select %p24, %s25, %s26
      %p30 = pneg %p24
      %p31 = scmp.eq.s32.totalorder %s15, 3
      %p32 = por %p30, %p31
      %p33 = scmp.ne.s32.totalorder %s25, %s28
      %p34 = scmp.eq.s32.totalorder %s15, 0
      %p35 = por %p33, %p34
      %p36 = scmp.ne.s32.totalorder %s25, %s28
      %p37 = scmp.eq.s32.totalorder %s20, 3
      %p38 = por %p36, %p37
      %p39 = scmp.ne.s32.totalorder %s28, %s29
      %p40 = scmp.eq.s32.totalorder %s20, 0
      %p41 = por %p39, %p40
      %p42 = scmp.ne.s32.totalorder %s28, %s29
      %p43 = scmp.eq.s32.totalorder %s21, 3
      %p44 = por %p42, %p43
      %p46 = scmp.ne.s32.totalorder %s29, %s45
      %p47 = scmp.eq.s32.totalorder %s21, 0
      %p48 = por %p46, %p47
      %s50 = sadd.s32 %s49, 1
      %p53 = scmp.eq.s32.totalorder %s15, 3
      %p54 = scmp.ne.s32.totalorder %s49, %s51
      %p55 = scmp.eq.s32.totalorder %s15, 0
      %p56 = por %p54, %p55
      %p57 = scmp.ne.s32.totalorder %s49, %s51
      %p58 = scmp.eq.s32.totalorder %s20, 3
      %p59 = por %p57, %p58
      %p60 = scmp.ne.s32.totalorder %s51, %s52
      %p61 = scmp.eq.s32.totalorder %s20, 0
      %p62 = por %p60, %p61
      %p63 = scmp.ne.s32.totalorder %s51, %s52
      %p64 = scmp.eq.s32.totalorder %s21, 3
      %p65 = por %p63, %p64
      %p67 = scmp.ne.s32.totalorder %s52, %s66
      %p68 = scmp.eq.s32.totalorder %s21, 0
      %p69 = por %p67, %p68
      %s70 = ssub.s32 %s15, %s22
      %p71 = scmp.eq.s32.totalorder %s70, 0
      %s73 = sadd.s32 %s72, 1
      %s74 = scalar_select %p71, %s72, %s73
      %p77 = pneg %p71
      %p78 = scmp.eq.s32.totalorder %s15, 3
      %p79 = por %p77, %p78
      %p80 = scmp.ne.s32.totalorder %s72, %s75
      %p81 = scmp.eq.s32.totalorder %s15, 0
      %p82 = por %p80, %p81
      %p83 = scmp.ne.s32.totalorder %s72, %s75
      %p84 = scmp.eq.s32.totalorder %s20, 3
      %p85 = por %p83, %p84
      %p86 = scmp.ne.s32.totalorder %s75, %s76
      %p87 = scmp.eq.s32.totalorder %s20, 0
      %p88 = por %p86, %p87
      %p89 = scmp.ne.s32.totalorder %s75, %s76
      %p90 = scmp.eq.s32.totalorder %s21, 3
      %p91 = por %p89, %p90
      %p93 = scmp.ne.s32.totalorder %s76, %s92
      %p94 = scmp.eq.s32.totalorder %s21, 0
      %p95 = por %p93, %p94
      %p96 = scmp.le.s32.totalorder 1, %s15
      %p97 = scmp.lt.s32.totalorder %s15, 5
      %p98 = pnand %p96, %p97
      %p99 = pneg %p98
      // Predicated region
      $region9: #{tpu_custom_call.1} parent=5 // pred_check
        _
      $region10: #{tpu_custom_call.1} parent=5 // pred_check_branch
        %101 = sbr.rel (%p98) target = $region12
      $region11: #{tpu_custom_call.1} parent=5 // pred_region
        %s102 = ssub.s32 %s15, 1
        // Predicated region
        $region13: #{tpu_custom_call.1} parent=11 // pred_check
          %p103 = pneg %p62
        $region14: #{tpu_custom_call.1} parent=11 // pred_check_branch
          %105 = sbr.rel (%p103) target = $region16
        $region15: #{tpu_custom_call.1} parent=11 // pred_region
          %s107 = ssub.s32 512, 512
          %108 = vsyncadd [#allocation6], %s107
          %s109 = sshll.u32 [#allocation5], 4
          %s110 = int_to_ptr.vmem [resolvable:$true] %s109
          %115 = dma.hbm_to_vmem [thread:$0]  %s1, 512, %s110, [#allocation6], 128, 128, 8
        $region16: #{tpu_custom_call.1} parent=11 // pred_fallthru
          _
      $region12: #{tpu_custom_call.1} parent=5 // pred_fallthru
        _
      %p116 = scmp.lt.s32.totalorder %s15, 4
      // Predicated region
      $region17: #{tpu_custom_call.1} parent=5 // pred_check
        %p117 = pneg %p116
      $region18: #{tpu_custom_call.1} parent=5 // pred_check_branch
        %119 = sbr.rel (%p117) target = $region20
      $region19: #{tpu_custom_call.1} parent=5 // pred_region
        // Predicated region
        $region21: #{tpu_custom_call.1} parent=19 // pred_check
          %p120 = pneg %p35
        $region22: #{tpu_custom_call.1} parent=19 // pred_check_branch
          %122 = sbr.rel (%p120) target = $region24
        $region23: #{tpu_custom_call.1} parent=19 // pred_region
          %s123 = sand.u32 %s25, 1
          %s124 = scalar_lea.sflag [#allocation3], %s123
          %s125 = sand.u32 %s25, 1
          %s126 = smul.addr %s125, 8
          %s127 = scalar_lea.vmem [#allocation2], %s126
          %s129 = ssub.s32 128, 128
          %130 = vsyncadd %s124, %s129
          %s131 = smul.addr %s15, 2
          %s132 = smul.addr %s131, 64
          %s133 = scalar_lea.hbm %s0, %s132
          %s134 = sshll.u32 %s127, 4
          %s135 = int_to_ptr.vmem [resolvable:$true] %s134
          %140 = dma.hbm_to_vmem [thread:$0]  %s133, 128, %s135, %s124, 64, 64, 4
        $region24: #{tpu_custom_call.1} parent=19 // pred_fallthru
          _
      $region20: #{tpu_custom_call.1} parent=5 // pred_fallthru
        _
      %p141 = scmp.le.s32.totalorder 1, %s15
      %p142 = scmp.lt.s32.totalorder %s15, 5
      %p143 = pnand %p141, %p142
      %p144 = pneg %p143
      // Predicated region
      $region25: #{tpu_custom_call.1} parent=5 // pred_check
        _
      $region26: #{tpu_custom_call.1} parent=5 // pred_check_branch
        %146 = sbr.rel (%p143) target = $region28
      $region27: #{tpu_custom_call.1} parent=5 // pred_region
        %s147 = ssub.s32 %s15, 1
        %s148 = sand.u32 %s28, 1
        %s149 = scalar_lea.sflag [#allocation3], %s148
        %s150 = sand.u32 %s28, 1
        %s151 = smul.addr %s150, 8
        %s152 = scalar_lea.vmem [#allocation2], %s151
        // Predicated region
        $region29: #{tpu_custom_call.1} parent=27 // pred_check
          %p153 = pneg %p41
        $region30: #{tpu_custom_call.1} parent=27 // pred_check_branch
          %155 = sbr.rel (%p153) target = $region32
        $region31: #{tpu_custom_call.1} parent=27 // pred_region
          %156 = dma.done %s149, 128
        $region32: #{tpu_custom_call.1} parent=27 // pred_fallthru
          _
        // Predicated region
        $region33: #{tpu_custom_call.1} parent=27 // pred_check
          %p157 = pneg %p62
        $region34: #{tpu_custom_call.1} parent=27 // pred_check_branch
          %159 = sbr.rel (%p157) target = $region36
        $region35: #{tpu_custom_call.1} parent=27 // pred_region
          %160 = dma.done [#allocation6], 512
        $region36: #{tpu_custom_call.1} parent=27 // pred_fallthru
          _
        %s161 = sand.u32 %s28, 1
        %s162 = scalar_lea.sflag [#allocation3], %s161
        %s163 = sand.u32 %s28, 1
        %s164 = smul.addr %s163, 8
        %s165 = scalar_lea.vmem [#allocation2], %s164
        %p166 = pneg %p41
        %p167 = pneg %p38
        %p168 = pneg %p62
        %p169 = pneg %p59
        %p170 = pneg %p88
        %p171 = pneg %p85
        %s172 = sand.u32 %s75, 1
        %s173 = scalar_lea.sflag [#allocation4], %s172
        %s174 = sand.u32 %s75, 1
        %s175 = smul.addr %s174, 16
        %s176 = scalar_lea.vmem [#allocation7], %s175
        %v178 = vld [vmem:[%s152] sm:$0xf]
        %v179 = vld [vmem:[%s152 + $0x4] sm:$0xf]
        %v180 = vld [vmem:[#allocation5] sm:$0xff]
        %v181 = vld [vmem:[#allocation5 + $0x8] sm:$0xff]
        %v182 = vld [vmem:[#allocation5 + $0x10] sm:$0xff]
        %v183 = vld [vmem:[#allocation5 + $0x18] sm:$0xff]
        %v186 = vunpack.c.l.b16 %v178
        %v187 = vunpack.c.l.b16 %v179
        %v188 = vpack.c.b16 %v187, %v186
        %v193 = vunpack.c.l.b16 %v180
        %v194 = vunpack.c.h.b16 %v180
        %v195 = vunpack.c.l.b16 %v181
        %v196 = vunpack.c.h.b16 %v181
        %v197 = vunpack.c.l.b16 %v182
        %v198 = vunpack.c.h.b16 %v182
        %v199 = vunpack.c.l.b16 %v183
        %v200 = vunpack.c.h.b16 %v183
        %v201 = vpack.c.b16 %v195, %v193
        %v202 = vpack.c.b16 %v196, %v194
        %v203 = vpack.c.b16 %v199, %v197
        %v204 = vpack.c.b16 %v200, %v198
        %vm209 = vcmask 261120
        %v211 = vsel %vm209, %v188, 0
        %213 = vmatprep.subr.bf16.mxu0 %v202
        %214 = vmatpush1.bf16.msra.mxu0 %v201
        %215 = vmatprep.subr.bf16.mxu0 %v204
        %216 = vmatpush1.bf16.msra.mxu0 %v203
        %217 = vmatprep.subr.bf16.mxu0 0
        %218 = vmatpush1.bf16.msra.mxu0 0
        %219 = vmatprep.subr.bf16.mxu0 0
        %220 = vmatpush1.bf16.msra.mxu0 0
        %221 = vmatprep.subr.bf16.mxu0 0
        %222 = vmatpush1.bf16.msra.mxu0 0
        %223 = vmatprep.subr.bf16.mxu0 0
        %224 = vmatpush1.bf16.msra.mxu0 0
        %225 = vmatprep.subr.bf16.mxu0 0
        %226 = vmatpush1.bf16.msra.mxu0 0
        %227 = vmatprep.subr.bf16.mxu0 0
        %228 = vmatpush1.bf16.msra.mxu0 0
        %229 = vmatprep.subr.bf16.mxu0 0
        %230 = vmatpush1.bf16.msra.mxu0 0
        %231 = vmatprep.subr.bf16.mxu0 0
        %232 = vmatpush1.bf16.msra.mxu0 0
        %233 = vmatprep.subr.bf16.mxu0 0
        %234 = vmatpush1.bf16.msra.mxu0 0
        %235 = vmatprep.subr.bf16.mxu0 0
        %236 = vmatpush1.bf16.msra.mxu0 0
        %237 = vmatprep.subr.bf16.mxu0 0
        %238 = vmatpush1.bf16.msra.mxu0 0
        %239 = vmatprep.subr.bf16.mxu0 0
        %240 = vmatpush1.bf16.msra.mxu0 0
        %241 = vmatprep.subr.bf16.mxu0 0
        %242 = vmatpush1.bf16.msra.mxu0 0
        %243 = vmatprep.subr.bf16.mxu0 0
        %244 = vmatpush1.bf16.msra.mxu0 0
        %245 = vmatprep.mubr.bf16.mxu0 0
        %246 = vmatmul.mubr.bf16.gmra.mrb[0].mxu0 %v211
        %v247 = vpop.f32.mrb[0].mxu0
        %v248 = vadd.f32 0.0, %v247
        %v249 = vpop.f32.mrb[0].mxu0
        %v250 = vadd.f32 0.0, %v249
        %v251 = vpop.f32.mrb[0].mxu0
        %v252 = vadd.f32 0.0, %v251
        %v253 = vpop.f32.mrb[0].mxu0
        %v254 = vadd.f32 0.0, %v253
        %255 = vdwg.mxu0
        %v256 = vpack.c.bf16 %v252, %v248
        %258 = vrot.lane.b32.xlu0 %v256, 112
        %v259 = vpop.permute.xlu0 %258
        %vm260 = vcmask 130048
        %v262 = vsel %vm260, %v259, 0
        %v265 = vsel %vm260, %v256, 0
        %267 = vmatprep.subr.bf16.mxu0 0
        %268 = vmatpush1.bf16.xpose.msra.mxu0 %v265
        %269 = vmatprep.subr.bf16.mxu0 0
        %270 = vmatpush1.bf16.xpose.msra.mxu0 0
        %271 = vmatprep.subr.bf16.mxu0 0
        %272 = vmatpush1.bf16.xpose.msra.mxu0 0
        %273 = vmatprep.subr.bf16.mxu0 0
        %274 = vmatpush1.bf16.xpose.msra.mxu0 0
        %275 = vmatprep.subr.bf16.mxu0 0
        %276 = vmatpush1.bf16.xpose.msra.mxu0 0
        %277 = vmatprep.subr.bf16.mxu0 0
        %278 = vmatpush1.bf16.xpose.msra.mxu0 0
        %279 = vmatprep.subr.bf16.mxu0 0
        %280 = vmatpush1.bf16.xpose.msra.mxu0 0
        %281 = vmatprep.subr.bf16.mxu0 0
        %282 = vmatpush1.bf16.xpose.msra.mxu0 0
        %283 = vmatprep.subr.bf16.mxu0 0
        %284 = vmatpush1.bf16.xpose.msra.mxu0 0
        %285 = vmatprep.subr.bf16.mxu0 0
        %286 = vmatpush1.bf16.xpose.msra.mxu0 0
        %287 = vmatprep.subr.bf16.mxu0 0
        %288 = vmatpush1.bf16.xpose.msra.mxu0 0
        %289 = vmatprep.subr.bf16.mxu0 0
        %290 = vmatpush1.bf16.xpose.msra.mxu0 0
        %291 = vmatprep.subr.bf16.mxu0 0
        %292 = vmatpush1.bf16.xpose.msra.mxu0 0
        %293 = vmatprep.subr.bf16.mxu0 0
        %294 = vmatpush1.bf16.xpose.msra.mxu0 0
        %295 = vmatprep.subr.bf16.mxu0 0
        %296 = vmatpush1.bf16.xpose.msra.mxu0 0
        %297 = vmatprep.subr.bf16.mxu0 0
        %298 = vmatpush1.bf16.xpose.msra.mxu0 0
        %299 = vmatprep.mubr.bf16.mxu0 0
        %300 = vmatmul.mubr.bf16.gmra.mrb[0].mxu0 %v262
        %v301 = vpop.f32.mrb[0].mxu0
        %v302 = vadd.f32 0.0, %v301
        %v303 = vpop.f32.mrb[0].mxu0
        %v304 = vpop.f32.mrb[0].mxu0
        %v305 = vadd.f32 0.0, %v304
        %v306 = vpop.f32.mrb[0].mxu0
        %307 = vdwg.mxu0
        %v308 = vlaneseq
        %v309 = vshrl.u32 %v308, 7
        %v310 = vadd.s32 %v309, 8
        %v311 = vlaneseq
        %v312 = vand.u32 %v311, 127
        %vm313 = vcmp.le.s32.totalorder %v312, %v309
        %vm314 = vcmp.le.s32.totalorder %v312, %v310
        %v315 = vsel %vm313, %v302, -inf
        %v316 = vsel %vm314, %v305, -inf
        %v317 = vsel %vm260, %v315, -inf
        %318 = vmax.xlane.f32.xlu0 %v317
        %v319 = vpop.xlane.xlu0 %318
        %v320 = vsel %vm260, %v316, -inf
        %321 = vmax.xlane.f32.xlu0 %v320
        %v322 = vpop.xlane.xlu0 %321
        %v323 = vsub.f32 %v315, %v319
        %v324 = vsub.f32 %v316, %v322
        %v325 = vmul.f32 %v323, 1.442695
        %v326 = vpow.pop %v325
        %v327 = vmul.f32 %v324, 1.442695
        %v328 = vpow.pop %v327
        %v329 = vsel %vm260, %v326, 0.0
        %330 = vadd.xlane.f32.xlu0 %v329
        %v331 = vpop.xlane.xlu0 %330
        %v332 = vsel %vm260, %v328, 0.0
        %333 = vadd.xlane.f32.xlu0 %v332
        %v334 = vpop.xlane.xlu0 %333
        %v335 = vrcp.pop %v331
        %v336 = vrcp.pop %v334
        %v337 = vmul.f32 %v326, %v335
        %v338 = vmul.f32 %v328, %v336
        %v339 = vpack.c.bf16 %v338, %v337
        %v340 = vpack.c.bf16 %v254, %v250
        %342 = vrot.lane.b32.xlu0 %v256, 96
        %v343 = vpop.permute.xlu0 %342
        %344 = vrot.lane.b32.xlu0 %v340, 96
        %v345 = vpop.permute.xlu0 %344
        %vm346 = vcmask 785408
        %v347 = vsel %vm346, %v343, %v345
        %v350 = vsel %vm260, %v339, 0
        %352 = vmatprep.subr.bf16.mxu0 0
        %353 = vmatpush1.bf16.msra.mxu0 %v347
        %354 = vmatprep.subr.bf16.mxu0 0
        %355 = vmatpush1.bf16.msra.mxu0 0
        %356 = vmatprep.subr.bf16.mxu0 0
        %357 = vmatpush1.bf16.msra.mxu0 0
        %358 = vmatprep.subr.bf16.mxu0 0
        %359 = vmatpush1.bf16.msra.mxu0 0
        %360 = vmatprep.subr.bf16.mxu0 0
        %361 = vmatpush1.bf16.msra.mxu0 0
        %362 = vmatprep.subr.bf16.mxu0 0
        %363 = vmatpush1.bf16.msra.mxu0 0
        %364 = vmatprep.subr.bf16.mxu0 0
        %365 = vmatpush1.bf16.msra.mxu0 0
        %366 = vmatprep.subr.bf16.mxu0 0
        %367 = vmatpush1.bf16.msra.mxu0 0
        %368 = vmatprep.subr.bf16.mxu0 0
        %369 = vmatpush1.bf16.msra.mxu0 0
        %370 = vmatprep.subr.bf16.mxu0 0
        %371 = vmatpush1.bf16.msra.mxu0 0
        %372 = vmatprep.subr.bf16.mxu0 0
        %373 = vmatpush1.bf16.msra.mxu0 0
        %374 = vmatprep.subr.bf16.mxu0 0
        %375 = vmatpush1.bf16.msra.mxu0 0
        %376 = vmatprep.subr.bf16.mxu0 0
        %377 = vmatpush1.bf16.msra.mxu0 0
        %378 = vmatprep.subr.bf16.mxu0 0
        %379 = vmatpush1.bf16.msra.mxu0 0
        %380 = vmatprep.subr.bf16.mxu0 0
        %381 = vmatpush1.bf16.msra.mxu0 0
        %382 = vmatprep.subr.bf16.mxu0 0
        %383 = vmatpush1.bf16.msra.mxu0 0
        %384 = vmatprep.mubr.bf16.mxu0 0
        %385 = vmatmul.mubr.bf16.gmra.mrb[0].mxu0 %v350
        %v386 = vpop.f32.mrb[0].mxu0
        %v387 = vadd.f32 0.0, %v386
        %v388 = vpop.f32.mrb[0].mxu0
        %v389 = vpop.f32.mrb[0].mxu0
        %v390 = vadd.f32 0.0, %v389
        %v391 = vpop.f32.mrb[0].mxu0
        %392 = vdwg.mxu0
        %393 = vst [vmem:[%s176] sm:$0xff] %v387
        %394 = vst [vmem:[%s176 + $0x8] sm:$0xff] %v390
        %s395 = sand.u32 %s75, 1
        %s396 = scalar_lea.sflag [#allocation4], %s395
        %s397 = sand.u32 %s75, 1
        %s398 = smul.addr %s397, 16
        %s399 = scalar_lea.vmem [#allocation7], %s398
        // Predicated region
        $region37: #{tpu_custom_call.1} parent=27 // pred_check
          %p400 = pneg %p85
        $region38: #{tpu_custom_call.1} parent=27 // pred_check_branch
          %402 = sbr.rel (%p400) target = $region40
        $region39: #{tpu_custom_call.1} parent=27 // pred_region
          %s404 = ssub.s32 256, 256
          %405 = vsyncadd %s396, %s404
          %s406 = smul.addr %s20, 2
          %s407 = smul.addr %s406, 128
          %s408 = scalar_lea.hbm %s2, %s407
          %s409 = sshll.u32 %s399, 4
          %s410 = int_to_ptr.vmem [resolvable:$true] %s409
          %415 = dma.vmem_to_hbm [thread:$0]  %s410, 256, %s408, %s396, 128, 128, 8
        $region40: #{tpu_custom_call.1} parent=27 // pred_fallthru
          _
      $region28: #{tpu_custom_call.1} parent=5 // pred_fallthru
        _
      %p416 = scmp.le.s32.totalorder 2, %s15
      // Predicated region
      $region41: #{tpu_custom_call.1} parent=5 // pred_check
        %p417 = pneg %p416
      $region42: #{tpu_custom_call.1} parent=5 // pred_check_branch
        %419 = sbr.rel (%p417) target = $region44
      $region43: #{tpu_custom_call.1} parent=5 // pred_region
        %s420 = ssub.s32 %s15, 2
        // Predicated region
        $region45: #{tpu_custom_call.1} parent=43 // pred_check
          %p421 = pneg %p91
        $region46: #{tpu_custom_call.1} parent=43 // pred_check_branch
          %423 = sbr.rel (%p421) target = $region48
        $region47: #{tpu_custom_call.1} parent=43 // pred_region
          %s424 = sand.u32 %s76, 1
          %s425 = scalar_lea.sflag [#allocation4], %s424
          %s426 = sand.u32 %s76, 1
          %s427 = smul.addr %s426, 16
          %s428 = scalar_lea.vmem [#allocation7], %s427
          %429 = dma.done %s425, 256
        $region48: #{tpu_custom_call.1} parent=43 // pred_fallthru
          _
      $region44: #{tpu_custom_call.1} parent=5 // pred_fallthru
        _
    $region6: #{tpu_custom_call.1} parent=1 // loop_footer
      %s19 = sadd.s32 1, %s15
    $region7: #{tpu_custom_call.1} parent=1 // loop_footer_branch
      %14 = sbr.rel target = $region3
    $region8: #{tpu_custom_call.1} parent=1 // loop_exit
      _
    %430 = vsyncpa [#allocation3], 1
    %s431 = scalar_lea.sflag [#allocation3], 1
    %432 = vsyncpa %s431, 1
    %433 = vsyncpa [#allocation6], 1
    %434 = vsyncpa [#allocation4], 1
    %s435 = scalar_lea.sflag [#allocation4], 1
    %436 = vsyncpa %s435, 1

</llo_original>
